<compile_context>
chip_gen: v6e
topology: v6e:2x2x1
jax: 0.10.0
libtpu: 0.0.40
codegen_flags: <defaults>
</compile_context>

<pallas_src>
import jax
import jax.numpy as jnp
from jax.experimental import pallas as pl
from jax.experimental.pallas import tpu as pltpu

_LANES = 128


def _round_up(x, m):
    return ((x + m - 1) // m) * m


def _vmem_limits():
    """(physical VMEM bytes, safe vmem_limit cap) for the current generation."""
    phys = 128 << 20  # v5e / v6e default
    try:
        info = pltpu.get_tpu_info()
        phys = int(getattr(info, "vmem_capacity_bytes", phys))
    except Exception:
        pass
    # v7x has only 64 MiB physical VMEM per TC: leave compiler scratch headroom.
    cap = (48 << 20) if phys <= (64 << 20) else (64 << 20)
    return phys, cap


def _pick_tm(M, cap, align):
    """Largest sublane-aligned tile <= cap that divides M (no ragged/padded
    tiles for aligned M); falls back to a ragged last tile otherwise."""
    cap = max(align, (cap // align) * align)
    if M % align == 0:
        q = M // align
        best = align
        d = 1
        while d * d <= q:
            if q % d == 0:
                for t in (d * align, (q // d) * align):
                    if align <= t <= cap and t > best:
                        best = t
            d += 1
        return best
    if M < align:
        return M            # block == full array extent (allowed)
    return cap              # ragged last tile; Pallas masks the partial block


def _ffn_kernel(h_ref, wt_ref, b_ref, o_ref):
    """One M-tile of: o = dropout(h) @ W^T + b  (eval-mode dropout == identity)."""
    y = jnp.dot(h_ref[...], wt_ref[...], preferred_element_type=jnp.float32)
    o_ref[...] = (y + b_ref[...]).astype(o_ref.dtype)


def prepare_ffn_params(weight, bias, *, compute_dtype=jnp.bfloat16):
    """One-time layout prep (per model, NOT per forward call).

    weight: [L, H] (torch nn.Linear layout), bias: [L]
    Returns W^T zero-padded to a lane-dense [H, Lp=128k] slab in the compute
    dtype, and the bias as a [1, Lp] float32 row.
    """
    L, H = weight.shape
    Lp = _round_up(max(L, 1), _LANES)
    wt = jnp.zeros((H, Lp), dtype=compute_dtype).at[:, :L].set(
        weight.T.astype(compute_dtype))
    b2d = jnp.zeros((1, Lp), dtype=jnp.float32).at[:, :L].set(
        bias.astype(jnp.float32))
    return wt, b2d


def bert_ffn_head(hidden_states, wt, b2d, num_labels, *, tm=None,
                  out_dtype=jnp.float32):
    """hidden_states: [B, S, H]; wt: [H, Lp] (from prepare_ffn_params); b2d: [1, Lp]."""
    B, S, H = hidden_states.shape
    Hw, Lp = wt.shape
    assert Hw == H and Lp % _LANES == 0
    L = num_labels
    M = B * S

    cdt = wt.dtype
    h2d = hidden_states.reshape(M, H)
    if h2d.dtype != cdt:
        # TODO(synk): in a real pipeline the encoder already emits activations
        # in the compute dtype, so this cast fuses upstream / disappears.
        h2d = h2d.astype(cdt)

    in_itemsize = jnp.dtype(cdt).itemsize
    out_itemsize = jnp.dtype(out_dtype).itemsize
    sub_align = 16 if in_itemsize < 4 else 8      # bf16 sublane packing

    phys_vmem, vmem_cap = _vmem_limits()
    # VMEM budget (Pallas double-buffers every operand by default):
    #   2 * h tile + 2 * out tile + 2 * (W^T + bias) + headroom.
    resident = 2 * (H * Lp * in_itemsize + Lp * 4)
    budget = min(vmem_cap, phys_vmem) - (4 << 20) - resident
    per_row = 2 * (H * in_itemsize + Lp * out_itemsize)
    tm_fit = max(sub_align, (budget // per_row) // sub_align * sub_align)

    if tm is None:
        tm = 4096 if in_itemsize < 4 else 2048    # mem-bound default at H <= 1024
    tm_cap = min(tm, tm_fit, _round_up(M, sub_align))
    TM = _pick_tm(M, tm_cap, sub_align)
    grid = (pl.cdiv(M, TM),)

    vmem_bytes = (2 * TM * H * in_itemsize
                  + 2 * TM * Lp * out_itemsize
                  + resident
                  + (2 << 20))
    vmem_bytes = int(min(max(vmem_bytes, 16 << 20), vmem_cap))

    # Useful work only (L, not Lp): this head is HBM-bound, tell XLA so.
    cost = pl.CostEstimate(
        flops=2 * M * H * L,
        transcendentals=0,
        bytes_accessed=(M * H * in_itemsize
                        + H * L * in_itemsize
                        + M * L * out_itemsize),
    )

    out2d = pl.pallas_call(
        _ffn_kernel,
        out_shape=jax.ShapeDtypeStruct((M, Lp), out_dtype),
        grid_spec=pltpu.PrefetchScalarGridSpec(
            num_scalar_prefetch=0,
            grid=grid,
            in_specs=[
                pl.BlockSpec((TM, H), lambda i: (i, 0)),   # streamed h tiles
                pl.BlockSpec((H, Lp), lambda i: (0, 0)),   # W^T, grid-invariant
                pl.BlockSpec((1, Lp), lambda i: (0, 0)),   # bias, grid-invariant
            ],
            out_specs=pl.BlockSpec((TM, Lp), lambda i: (i, 0)),
        ),
        compiler_params=pltpu.CompilerParams(
            # No reduction axis; lets v7x shard M tiles across both TensorCores.
            dimension_semantics=("parallel",),
            vmem_limit_bytes=vmem_bytes,
        ),
        cost_estimate=cost,
    )(h2d, wt, b2d)

    return out2d[:, :L].reshape(B, S, L)


if __name__ == "__main__":
    # Small deterministic shapes consistent with the module's forward:
    #   encoder output h : [batch=2, seq=8, hidden=32]
    #   ffn            W : [num_labels=8, hidden=32],  b : [num_labels=8]
    B, S, H, L = 2, 8, 32, 8

    key = jax.random.PRNGKey(0)
    k_h, k_w, k_b = jax.random.split(key, 3)

    hidden_states = jax.random.normal(k_h, (B, S, H), dtype=jnp.float32)
    weight = jax.random.normal(k_w, (L, H), dtype=jnp.float32) * 0.02
    bias = jax.random.normal(k_b, (L,), dtype=jnp.float32) * 0.02

    # Plain-JAX reference for the implemented (post-encoder) path.
    ref = (hidden_states.reshape(B * S, H) @ weight.T + bias).reshape(B, S, L)

    # Recommended config: bf16 inputs, f32 accumulation/bias (one-time prep).
    wt_bf16, b2d = prepare_ffn_params(weight, bias, compute_dtype=jnp.bfloat16)
    out_bf16 = jax.block_until_ready(bert_ffn_head(hidden_states, wt_bf16, b2d, L))
    assert out_bf16.shape == (B, S, L)
    assert jnp.allclose(out_bf16, ref, atol=2e-2, rtol=2e-2)

    # Exact f32 path cross-check.
    wt_f32, b2d_f32 = prepare_ffn_params(weight, bias, compute_dtype=jnp.float32)
    out_f32 = jax.block_until_ready(bert_ffn_head(hidden_states, wt_f32, b2d_f32, L))
    assert jnp.allclose(out_f32, ref, atol=1e-5, rtol=1e-5)

    print("KERNEL_OK")
</pallas_src>

<mosaic_0001>
module attributes {stable_mosaic.version = 11 : i64} {
  func.func @_ffn_kernel(%arg0: i32, %arg1: memref<16x32xbf16, #tpu.memory_space<vmem>>, %arg2: memref<32x128xbf16, #tpu.memory_space<vmem>>, %arg3: memref<1x128xf32, #tpu.memory_space<vmem>>, %arg4: memref<16x128xf32, #tpu.memory_space<vmem>>) attributes {dimension_semantics = [#tpu.dimension_semantics<parallel>], iteration_bounds = array<i64: 1>, scalar_prefetch = 0 : i64, scratch_operands = 0 : i64, tpu.core_type = #tpu.core_type<tc>, window_params = [{transform_indices = @transform_0, window_bounds = array<i64: 16, 32>}, {pipeline_mode = #tpu.pipeline_mode<synchronous>, transform_indices = @transform_1, window_bounds = array<i64: 32, 128>}, {pipeline_mode = #tpu.pipeline_mode<synchronous>, transform_indices = @transform_2, window_bounds = array<i64: 1, 128>}, {transform_indices = @transform_3, window_bounds = array<i64: 16, 128>}]} {
    %c0 = arith.constant 0 : index
    %c0_0 = arith.constant 0 : index
    %0 = vector.load %arg1[%c0, %c0_0] : memref<16x32xbf16, #tpu.memory_space<vmem>>, vector<16x32xbf16>
    %c0_1 = arith.constant 0 : index
    %c0_2 = arith.constant 0 : index
    %1 = vector.load %arg2[%c0_1, %c0_2] : memref<32x128xbf16, #tpu.memory_space<vmem>>, vector<32x128xbf16>
    %cst = arith.constant dense<0.000000e+00> : vector<16x128xf32>
    %2 = tpu.matmul %0, %1, %cst {dimension_numbers = #tpu.dot_dimension_numbers<[1], [0], [0], [1], [0, 0, 1, 1], [], []>} : vector<16x32xbf16>, vector<32x128xbf16>, vector<16x128xf32> -> vector<16x128xf32>
    %c0_3 = arith.constant 0 : index
    %c0_4 = arith.constant 0 : index
    %3 = vector.load %arg3[%c0_3, %c0_4] : memref<1x128xf32, #tpu.memory_space<vmem>>, vector<1x128xf32>
    %4 = vector.broadcast %3 : vector<1x128xf32> to vector<16x128xf32>
    %5 = arith.addf %2, %4 : vector<16x128xf32>
    %c0_5 = arith.constant 0 : index
    %c0_6 = arith.constant 0 : index
    %6 = vector.load %arg4[%c0_5, %c0_6] : memref<16x128xf32, #tpu.memory_space<vmem>>, vector<16x128xf32>
    tpu.vector_store %arg4[%c0_5, %c0_6], %5 {strides = array<i32>} : memref<16x128xf32, #tpu.memory_space<vmem>>, vector<16x128xf32>,
    return
  }
  func.func @transform_0(%arg0: i32) -> (i32, i32) {
    %c0_i32 = arith.constant 0 : i32
    %c0_i32_0 = arith.constant 0 : i32
    return %arg0, %c0_i32 : i32, i32
  }
  func.func @transform_1(%arg0: i32) -> (i32, i32) {
    %c0_i32 = arith.constant 0 : i32
    %c0_i32_0 = arith.constant 0 : i32
    %c0_i32_1 = arith.constant 0 : i32
    return %c0_i32, %c0_i32_0 : i32, i32
  }
  func.func @transform_2(%arg0: i32) -> (i32, i32) {
    %c0_i32 = arith.constant 0 : i32
    %c0_i32_0 = arith.constant 0 : i32
    %c0_i32_1 = arith.constant 0 : i32
    return %c0_i32, %c0_i32_0 : i32, i32
  }
  func.func @transform_3(%arg0: i32) -> (i32, i32) {
    %c0_i32 = arith.constant 0 : i32
    %c0_i32_0 = arith.constant 0 : i32
    return %arg0, %c0_i32 : i32, i32
  }
}

</mosaic_0001>

<llo_original>
// kernel: tpu_custom_call.1
$region0: #{tpu_custom_call.1}
  #allocation0 [shape = 'u32[]', space=smem, size = 0x4, offset = 0x4, fixed_abs, tag = 'smem constant byte address 0x4 - core index']
  #allocation1 [shape = 'u32[144,128]{1,0:T(1,128)}', space=vmem, size = 0x12000, scoped, tag = 'internal scratch']
  %s0 = inlined_call_operand.hbm [shape: bf16[16,32], index: 0, kind: input, shape index: {}]
  %s1 = inlined_call_operand.hbm [shape: bf16[32,128], index: 1, kind: input, shape index: {}]
  %s2 = inlined_call_operand.vmem [shape: f32[1,128], index: 2, kind: input, shape index: {}]
  %s3 = inlined_call_operand.hbm [shape: f32[16,128], index: 3, kind: output, shape index: {}]
  %s4 = sld [smem:[#allocation0]]
  $region30: #{tpu_custom_call.1} parent=0
    _
  %s6 = ssub.s32 1, %s4
  %s7 = scalar_select 0, %s6, %s4
  $region1: #{tpu_custom_call.1} parent=0
    #allocation2 [shape = 'u8[4096]{0}', space=vmem, size = 0x1000, scoped, tag = 'input window, operand 0, single buffered']
    #allocation3 [shape = 's32[1]{0}', space=sflag, size = 0x4, scoped, tag = 'scoped memory for tpu_custom_call.1']
    #allocation4 [shape = 's32[1]{0}', space=sflag, size = 0x4, scoped, tag = 'scoped memory for tpu_custom_call.1']
    #allocation5 [shape = 'u8[8192]{0}', space=vmem, size = 0x2000, scoped, tag = 'input window, operand 1, single buffered']
    #allocation6 [shape = 's32[1]{0}', space=sflag, size = 0x4, scoped, tag = 'scoped memory for tpu_custom_call.1']
    #allocation7 [shape = 'u8[8192]{0}', space=vmem, size = 0x2000, scoped, tag = 'output window, operand 0, single buffered']
    %8 = vsyncpa [#allocation3], 0
    %9 = vsyncpa [#allocation6], 0
    %10 = vsyncpa [#allocation4], 0
    // Predicated region
    $region2: #{tpu_custom_call.1} parent=1 // pred_check
      _
    $region3: #{tpu_custom_call.1} parent=1 // pred_check_branch
      %12 = sbr.rel (0) target = $region5
    $region4: #{tpu_custom_call.1} parent=1 // pred_region
      %s14 = ssub.s32 128, 128
      %15 = vsyncadd [#allocation3], %s14
      %s16 = sshll.u32 [#allocation2], 4
      %s17 = int_to_ptr.vmem [resolvable:$true] %s16
      %22 = dma.hbm_to_vmem [thread:$0]  %s0, 128, %s17, [#allocation3], 64, 64, 4
    $region5: #{tpu_custom_call.1} parent=1 // pred_fallthru
      _
    // Predicated region
    $region6: #{tpu_custom_call.1} parent=1 // pred_check
      _
    $region7: #{tpu_custom_call.1} parent=1 // pred_check_branch
      %24 = sbr.rel (0) target = $region9
    $region8: #{tpu_custom_call.1} parent=1 // pred_region
      %s26 = ssub.s32 256, 256
      %27 = vsyncadd [#allocation6], %s26
      %s28 = sshll.u32 [#allocation5], 4
      %s29 = int_to_ptr.vmem [resolvable:$true] %s28
      %34 = dma.hbm_to_vmem [thread:$0]  %s1, 256, %s29, [#allocation6], 64, 64, 4
    $region9: #{tpu_custom_call.1} parent=1 // pred_fallthru
      _
    // Predicated region
    $region10: #{tpu_custom_call.1} parent=1 // pred_check
      _
    $region11: #{tpu_custom_call.1} parent=1 // pred_check_branch
      %36 = sbr.rel (0) target = $region13
    $region12: #{tpu_custom_call.1} parent=1 // pred_region
      _
    $region13: #{tpu_custom_call.1} parent=1 // pred_fallthru
      _
    // Predicated region
    $region14: #{tpu_custom_call.1} parent=1 // pred_check
      _
    $region15: #{tpu_custom_call.1} parent=1 // pred_check_branch
      %38 = sbr.rel (0) target = $region17
    $region16: #{tpu_custom_call.1} parent=1 // pred_region
      %39 = dma.done [#allocation3], 128
    $region17: #{tpu_custom_call.1} parent=1 // pred_fallthru
      _
    // Predicated region
    $region18: #{tpu_custom_call.1} parent=1 // pred_check
      _
    $region19: #{tpu_custom_call.1} parent=1 // pred_check_branch
      %41 = sbr.rel (0) target = $region21
    $region20: #{tpu_custom_call.1} parent=1 // pred_region
      %42 = dma.done [#allocation6], 256
    $region21: #{tpu_custom_call.1} parent=1 // pred_fallthru
      _
    %v44 = vld [vmem:[#allocation2] sm:$0xf]
    %v45 = vld [vmem:[#allocation2 + $0x4] sm:$0xf]
    %v46 = vld [vmem:[#allocation5] sm:$0xf]
    %v47 = vld [vmem:[#allocation5 + $0x4] sm:$0xf]
    %v48 = vld [vmem:[#allocation5 + $0x8] sm:$0xf]
    %v49 = vld [vmem:[#allocation5 + $0xc] sm:$0xf]
    %v50 = vld [vmem:[%s2] sm:$0x1]
    %v52 = vlaneseq
    %v53 = vshrl.u32 %v52, 7
    %v54 = vsub.s32 0, %v53
    %v55 = vrot.slane %v50, %v54
    %v59 = vunpack.c.l.b16 %v44
    %v60 = vunpack.c.l.b16 %v45
    %v61 = vpack.c.b16 %v60, %v59
    %v66 = vunpack.c.l.b16 %v46
    %v67 = vunpack.c.l.b16 %v47
    %v68 = vunpack.c.l.b16 %v48
    %v69 = vunpack.c.l.b16 %v49
    %v70 = vpack.c.b16 %v67, %v66
    %v71 = vpack.c.b16 %v69, %v68
    %vm74 = vcmask 261120
    %v76 = vsel %vm74, %v61, 0
    %78 = vmatprep.subr.bf16.mxu0 0
    %79 = vmatpush1.bf16.msra.mxu0 0
    %80 = vmatprep.subr.bf16.mxu0 0
    %81 = vmatpush1.bf16.msra.mxu0 0
    %82 = vmatprep.subr.bf16.mxu0 0
    %83 = vmatpush1.bf16.msra.mxu0 0
    %84 = vmatprep.subr.bf16.mxu0 0
    %85 = vmatpush1.bf16.msra.mxu0 0
    %86 = vmatprep.subr.bf16.mxu0 0
    %87 = vmatpush1.bf16.msra.mxu0 0
    %88 = vmatprep.subr.bf16.mxu0 0
    %89 = vmatpush1.bf16.msra.mxu0 0
    %90 = vmatprep.subr.bf16.mxu0 0
    %91 = vmatpush1.bf16.msra.mxu0 %v71
    %92 = vmatprep.subr.bf16.mxu0 0
    %93 = vmatpush1.bf16.msra.mxu0 %v70
    %94 = vmatprep.subr.bf16.mxu0 0
    %95 = vmatpush2.bf16.msra.mxu0 0
    %96 = vmatprep.subr.bf16.mxu0 0
    %97 = vmatpush2.bf16.msra.mxu0 0
    %98 = vmatprep.subr.bf16.mxu0 0
    %99 = vmatpush2.bf16.msra.mxu0 0
    %100 = vmatprep.subr.bf16.mxu0 0
    %101 = vmatpush2.bf16.msra.mxu0 0
    %102 = vmatprep.subr.bf16.mxu0 0
    %103 = vmatpush2.bf16.msra.mxu0 0
    %104 = vmatprep.subr.bf16.mxu0 0
    %105 = vmatpush2.bf16.msra.mxu0 0
    %106 = vmatprep.subr.bf16.mxu0 0
    %107 = vmatpush2.bf16.msra.mxu0 0
    %108 = vmatprep.subr.bf16.mxu0 0
    %109 = vmatpush2.bf16.msra.mxu0 0
    %110 = vmatprep.mubr.bf16.mxu0 0
    %111 = vmatmul.mubr.bf16.gmra.mxu0 %v76
    %v112 = vpop.f32.mrf.mxu0
    %v113 = vadd.f32 %v55, %v112
    %v114 = vpop.f32.mrf.mxu0
    %v115 = vpop.f32.mrf.mxu0
    %v116 = vadd.f32 %v55, %v115
    %v117 = vpop.f32.mrf.mxu0
    %118 = vdwg.mxu0
    %119 = vst [vmem:[#allocation7] sm:$0xff] %v113
    %120 = vst [vmem:[#allocation7 + $0x8] sm:$0xff] %v116
    // Predicated region
    $region22: #{tpu_custom_call.1} parent=1 // pred_check
      _
    $region23: #{tpu_custom_call.1} parent=1 // pred_check_branch
      %122 = sbr.rel (0) target = $region25
    $region24: #{tpu_custom_call.1} parent=1 // pred_region
      %s124 = ssub.s32 256, 256
      %125 = vsyncadd [#allocation4], %s124
      %s126 = sshll.u32 [#allocation7], 4
      %s127 = int_to_ptr.vmem [resolvable:$true] %s126
      %132 = dma.vmem_to_hbm [thread:$0]  %s127, 256, %s3, [#allocation4], 128, 128, 8
    $region25: #{tpu_custom_call.1} parent=1 // pred_fallthru
      _
    // Predicated region
    $region26: #{tpu_custom_call.1} parent=1 // pred_check
      _
    $region27: #{tpu_custom_call.1} parent=1 // pred_check_branch
      %134 = sbr.rel (0) target = $region29
    $region28: #{tpu_custom_call.1} parent=1 // pred_region
      %135 = dma.done [#allocation4], 256
    $region29: #{tpu_custom_call.1} parent=1 // pred_fallthru
      _
    %136 = vsyncpa [#allocation3], 1
    %137 = vsyncpa [#allocation6], 1
    %138 = vsyncpa [#allocation4], 1

</llo_original>
